<compile_context>
chip_gen: v6e
topology: v6e:2x2x1
jax: 0.10.0
libtpu: 0.0.40
codegen_flags: <defaults>
</compile_context>

<pallas_src>
import functools
import math

import jax
import jax.numpy as jnp
from jax.experimental import pallas as pl
from jax.experimental.pallas import tpu as pltpu


def _pe_kernel(per_row: int, col_ref, o_ref):
    """Write one (tile_r, L) tile of the flattened PE buffer.

    col_ref: (3, L) per-lane constants, resident in VMEM across grid steps:
      row 0: inv_freq[lane] = exp(-ln(10000) * 2*(j//2) / d_model)   (j = lane % d_model)
      row 1: pos_off[lane]  = lane // d_model   (sequence-position offset within a slab row)
      row 2: even[lane]     = 1.0 if feature index j is even else 0.0
    o_ref: (tile_r, L) output tile.  Element (r, c) of grid step i corresponds to
      sequence position s = (i*tile_r + r) * per_row + pos_off[c], feature j = c % d_model.
    """
    tile_r, _ = o_ref.shape
    i = pl.program_id(0)

    inv_freq = col_ref[0:1, :]            # (1, L)
    pos_off = col_ref[1:2, :]             # (1, L)
    even = col_ref[2:3, :]                # (1, L)

    row = jax.lax.broadcasted_iota(jnp.int32, (tile_r, 1), 0) + i * tile_r
    pos = row.astype(jnp.float32) * jnp.float32(per_row) + pos_off   # (tile_r, L)
    angle = pos * inv_freq                                           # (tile_r, L)
    # Exact sin/cos select (accuracy > one-transcendental trick for init-time kernel).
    o_ref[...] = jnp.where(even > 0.5, jnp.sin(angle), jnp.cos(angle))


def build_positional_encoding(max_len: int, d_model: int) -> jax.Array:
    """Compute the (1, max_len, d_model) float32 sinusoidal PE buffer."""
    assert d_model % 2 == 0, "d_model must be even (matches PyTorch's 0::2/1::2 slicing)"

    # Lane-dense flat layout: L is a multiple of 128 (unmasked stores) and of
    # d_model (row-invariant per-lane constants).
    g = math.gcd(d_model, 128)
    per_row = 128 // g                       # original sequence positions per slab row
    L = d_model * per_row                    # slab lane width, multiple of 128
    rows = pl.cdiv(max_len, per_row)         # slab rows; pad waste <= per_row - 1 positions
    padded_len = rows * per_row

    # Per-lane constants, computed once in plain JAX (tiny, init-time).
    lane = jnp.arange(L, dtype=jnp.int32)
    j = lane % d_model
    inv_freq = jnp.exp(
        (2 * (j // 2)).astype(jnp.float32) * (-math.log(10000.0) / d_model))
    pos_off = (lane // d_model).astype(jnp.float32)
    even = (j % 2 == 0).astype(jnp.float32)
    col = jnp.stack([inv_freq, pos_off, even], axis=0)               # (3, L)

    # Tile the slab rows: ~2 MiB f32 blocks, >= 2 grid steps when possible so
    # "parallel" shards across both TensorCores on v7x.
    if rows <= 8:
        tile_r = rows                         # single block equal to full dims
    else:
        target = max(8, (1 << 19) // L)       # ~2 MiB f32 per block
        tile_r = min(target, max(8, rows // 2))
        tile_r = max(8, (tile_r // 8) * 8)
    grid_n = pl.cdiv(rows, tile_r)

    pe_flat = pl.pallas_call(
        functools.partial(_pe_kernel, per_row),
        out_shape=jax.ShapeDtypeStruct((rows, L), jnp.float32),
        grid=(grid_n,),
        in_specs=[pl.BlockSpec((3, L), lambda i: (0, 0))],           # resident constants
        out_specs=pl.BlockSpec((tile_r, L), lambda i: (i, 0)),
        compiler_params=pltpu.CompilerParams(
            dimension_semantics=("parallel",)),
    )(col)

    if padded_len == max_len:
        # Row-major contiguous reshape — free, no extra HBM copy.
        return pe_flat.reshape(1, max_len, d_model)
    # Rare pad case (max_len not a multiple of per_row): one small slice copy.
    return pe_flat.reshape(-1)[: max_len * d_model].reshape(1, max_len, d_model)


class PositionalEncoding:
    """Pallas version of the PyTorch PositionalEncoding module."""

    def __init__(self, d_model: int, max_len: int):
        self.d_model = d_model
        self.max_len = max_len
        # Buffer precomputed once (register_buffer semantics); forward is a slice.
        self.pe = build_positional_encoding(max_len, d_model)

    def __call__(self, x: jax.Array) -> jax.Array:
        # x: [B, S, D]; only S is used (same as the PyTorch forward).
        seq_len = x.shape[1]
        assert seq_len <= self.max_len, "sequence longer than max_len"
        return self.pe[:, :seq_len]


if __name__ == "__main__":
    d_model = 32
    max_len = 16
    batch, seq = 2, 8

    key = jax.random.PRNGKey(0)
    x = jax.random.normal(key, (batch, seq, d_model), dtype=jnp.float32)

    module = PositionalEncoding(d_model, max_len)
    pe = module(x)
    pe = jax.block_until_ready(pe)

    # Reference: plain-JAX version of the PyTorch buffer math.
    position = jnp.arange(max_len, dtype=jnp.float32)[:, None]
    div_term = jnp.exp(
        jnp.arange(0, d_model, 2, dtype=jnp.float32) * (-math.log(10000.0) / d_model)
    )
    ref = jnp.zeros((max_len, d_model), dtype=jnp.float32)
    ref = ref.at[:, 0::2].set(jnp.sin(position * div_term))
    ref = ref.at[:, 1::2].set(jnp.cos(position * div_term))
    ref = ref[None, :seq, :]

    assert pe.shape == (1, seq, d_model)
    assert jnp.allclose(pe, ref, atol=1e-5, rtol=1e-5)
    print("KERNEL_OK")
</pallas_src>

<mosaic_0001>
module attributes {stable_mosaic.version = 11 : i64} {
  func.func @_pe_kernel(%arg0: i32, %arg1: memref<3x128xf32, #tpu.memory_space<vmem>>, %arg2: memref<4x128xf32, #tpu.memory_space<vmem>>) attributes {dimension_semantics = [#tpu.dimension_semantics<parallel>], iteration_bounds = array<i64: 1>, scalar_prefetch = 0 : i64, scratch_operands = 0 : i64, tpu.core_type = #tpu.core_type<tc>, window_params = [{pipeline_mode = #tpu.pipeline_mode<synchronous>, transform_indices = @transform_0, window_bounds = array<i64: 3, 128>}, {transform_indices = @transform_1, window_bounds = array<i64: 4, 128>}]} {
    %c0 = arith.constant 0 : index
    %c0_0 = arith.constant 0 : index
    %0 = vector.load %arg1[%c0, %c0_0] : memref<3x128xf32, #tpu.memory_space<vmem>>, vector<1x128xf32>
    %c1 = arith.constant 1 : index
    %c0_1 = arith.constant 0 : index
    %1 = vector.load %arg1[%c1, %c0_1] : memref<3x128xf32, #tpu.memory_space<vmem>>, vector<1x128xf32>
    %c2 = arith.constant 2 : index
    %c0_2 = arith.constant 0 : index
    %2 = vector.load %arg1[%c2, %c0_2] : memref<3x128xf32, #tpu.memory_space<vmem>>, vector<1x128xf32>
    %3 = tpu.iota {dimensions = array<i32: 0>} : vector<4x1xi32>
    %c4_i32 = arith.constant 4 : i32
    %4 = arith.muli %arg0, %c4_i32 : i32
    %5 = vector.broadcast %4 : i32 to vector<4x1xi32>
    %6 = arith.addi %3, %5 : vector<4x1xi32>
    %7 = arith.sitofp %6 : vector<4x1xi32> to vector<4x1xf32>
    %cst = arith.constant 4.000000e+00 : f32
    %8 = vector.broadcast %cst : f32 to vector<4x1xf32>
    %9 = arith.mulf %7, %8 : vector<4x1xf32>
    %10 = vector.broadcast %9 : vector<4x1xf32> to vector<4x128xf32>
    %11 = vector.broadcast %1 : vector<1x128xf32> to vector<4x128xf32>
    %12 = arith.addf %10, %11 : vector<4x128xf32>
    %13 = vector.broadcast %0 : vector<1x128xf32> to vector<4x128xf32>
    %14 = arith.mulf %12, %13 : vector<4x128xf32>
    %cst_3 = arith.constant 5.000000e-01 : f32
    %15 = vector.broadcast %cst_3 : f32 to vector<1x128xf32>
    %16 = arith.cmpf ogt, %2, %15 : vector<1x128xf32>
    %17 = math.sin %14 : vector<4x128xf32>
    %18 = math.cos %14 : vector<4x128xf32>
    %19 = vector.shape_cast %16 : vector<1x128xi1> to vector<1x128xi1>
    %20 = vector.broadcast %19 : vector<1x128xi1> to vector<4x128xi1>
    %21 = arith.select %20, %17, %18 : vector<4x128xi1>, vector<4x128xf32>
    %c0_4 = arith.constant 0 : index
    %c0_5 = arith.constant 0 : index
    %22 = vector.load %arg2[%c0_4, %c0_5] : memref<4x128xf32, #tpu.memory_space<vmem>>, vector<4x128xf32>
    tpu.vector_store %arg2[%c0_4, %c0_5], %21 {strides = array<i32>} : memref<4x128xf32, #tpu.memory_space<vmem>>, vector<4x128xf32>,
    return
  }
  func.func @transform_0(%arg0: i32) -> (i32, i32) {
    %c0_i32 = arith.constant 0 : i32
    %c0_i32_0 = arith.constant 0 : i32
    %c0_i32_1 = arith.constant 0 : i32
    return %c0_i32, %c0_i32_0 : i32, i32
  }
  func.func @transform_1(%arg0: i32) -> (i32, i32) {
    %c0_i32 = arith.constant 0 : i32
    %c0_i32_0 = arith.constant 0 : i32
    return %arg0, %c0_i32 : i32, i32
  }
}

</mosaic_0001>

<llo_original>
// kernel: tpu_custom_call.1
$region0: #{tpu_custom_call.1}
  #allocation0 [shape = 'u32[]', space=smem, size = 0x4, offset = 0x4, fixed_abs, tag = 'smem constant byte address 0x4 - core index']
  #allocation1 [shape = 'u32[144,128]{1,0:T(1,128)}', space=vmem, size = 0x12000, scoped, tag = 'internal scratch']
  %s0 = inlined_call_operand.hbm [shape: f32[3,128], index: 0, kind: input, shape index: {}]
  %s1 = inlined_call_operand.hbm [shape: f32[4,128], index: 1, kind: output, shape index: {}]
  %s2 = sld [smem:[#allocation0]]
  $region18: #{tpu_custom_call.1} parent=0
    _
  %s4 = ssub.s32 1, %s2
  %s5 = scalar_select 0, %s4, %s2
  $region1: #{tpu_custom_call.1} parent=0
    #allocation2 [shape = 'u8[2048]{0}', space=vmem, size = 0x800, scoped, tag = 'input window, operand 0, single buffered']
    #allocation3 [shape = 's32[1]{0}', space=sflag, size = 0x4, scoped, tag = 'scoped memory for tpu_custom_call.1']
    #allocation4 [shape = 's32[1]{0}', space=sflag, size = 0x4, scoped, tag = 'scoped memory for tpu_custom_call.1']
    #allocation5 [shape = 'u8[2048]{0}', space=vmem, size = 0x800, scoped, tag = 'output window, operand 0, single buffered']
    %6 = vsyncpa [#allocation3], 0
    %7 = vsyncpa [#allocation4], 0
    // Predicated region
    $region2: #{tpu_custom_call.1} parent=1 // pred_check
      _
    $region3: #{tpu_custom_call.1} parent=1 // pred_check_branch
      %9 = sbr.rel (0) target = $region5
    $region4: #{tpu_custom_call.1} parent=1 // pred_region
      %s11 = ssub.s32 64, 64
      %12 = vsyncadd [#allocation3], %s11
      %s14 = sshll.u32 [#allocation2], 4
      %s15 = int_to_ptr.vmem [resolvable:$true] %s14
      %17 = dma.hbm_to_vmem [thread:$0]  %s0, 64, %s15, [#allocation3]
    $region5: #{tpu_custom_call.1} parent=1 // pred_fallthru
      _
    // Predicated region
    $region6: #{tpu_custom_call.1} parent=1 // pred_check
      _
    $region7: #{tpu_custom_call.1} parent=1 // pred_check_branch
      %19 = sbr.rel (0) target = $region9
    $region8: #{tpu_custom_call.1} parent=1 // pred_region
      %20 = dma.done [#allocation3], 64
    $region9: #{tpu_custom_call.1} parent=1 // pred_fallthru
      _
    %v21 = vld [vmem:[#allocation2] sm:$0x1]
    %v22 = vld [vmem:[#allocation2 + $0x1] sm:$0x1]
    %v23 = vld [vmem:[#allocation2 + $0x2] sm:$0x1]
    %v24 = vlaneseq
    %v25 = vshrl.u32 %v24, 7
    %s26 = smul.u32 0, 4
    %v27 = vstv %s26
    %v28 = vadd.s32 %v25, %v27
    %v29 = vcvt.s32.f32 %v28
    %v30 = vmul.f32 %v29, 4.0
    %v31 = vlaneseq
    %v32 = vshrl.u32 %v31, 7
    %v33 = vsub.s32 0, %v32
    %v34 = vrot.slane %v22, %v33
    %v35 = vadd.f32 %v30, %v34
    %v36 = vlaneseq
    %v37 = vshrl.u32 %v36, 7
    %v38 = vsub.s32 0, %v37
    %v39 = vrot.slane %v21, %v38
    %v40 = vmul.f32 %v35, %v39
    %vm41 = vcmp.gt.f32.partialorder %v23, 0.5
    %v42 = vand.u32 2147483647, %v40
    %vm43 = vcmp.le.f32.partialorder %v42, 0.7853982
    %vm44 = vcmp.lt.s32.totalorder %v40, 0
    %v45 = vand.u32 %v40, 2139095040
    %v46 = vshrl.u32 %v45, 23
    %v47 = vsub.s32 %v46, 127
    %v48 = vand.u32 2147483647, %v40
    %v49 = vand.u32 %v48, 8388607
    %v50 = vor.u32 %v49, 8388608
    %v51 = vsub.s32 0, %v50
    %v52 = vadd.s32 %v47, 1
    %vm53 = vcmp.gt.s32.totalorder %v52, 0
    %v54 = vsel %vm53, %v52, 0
    %v55 = vshrl.u32 %v54, 5
    %v56 = vand.u32 %v54, 31
    %v57 = vsub.s32 32, %v56
    %v58 = vshrl.u32 683565275, %v57
    %v59 = vshll.u32 683565275, %v56
    %v60 = vshrl.u32 2475754826, %v57
    %v61 = vor.u32 %v59, %v60
    %v62 = vshll.u32 2475754826, %v56
    %v63 = vshrl.u32 2131351028, %v57
    %v64 = vor.u32 %v62, %v63
    %v65 = vshll.u32 2131351028, %v56
    %v66 = vshrl.u32 2102212464, %v57
    %v67 = vor.u32 %v65, %v66
    %v68 = vshll.u32 2102212464, %v56
    %v69 = vshrl.u32 920167782, %v57
    %v70 = vor.u32 %v68, %v69
    %v71 = vshll.u32 920167782, %v56
    %v72 = vshrl.u32 1326507024, %v57
    %v73 = vor.u32 %v71, %v72
    %vm74 = vcmp.lt.s32.totalorder %v55, 1
    %vm75 = vcmp.lt.s32.totalorder %v55, 2
    %vm76 = vcmp.lt.s32.totalorder %v55, 3
    %vm77 = vcmp.lt.s32.totalorder %v55, 4
    %v78 = vsel %vm74, %v58, %v61
    %v79 = vsel %vm77, %v67, 2102212464
    %v80 = vsel %vm76, %v64, %v79
    %v81 = vsel %vm75, %v78, %v80
    %v82 = vsel %vm74, %v61, %v64
    %v83 = vsel %vm77, %v70, 920167782
    %v84 = vsel %vm76, %v67, %v83
    %v85 = vsel %vm75, %v82, %v84
    %v86 = vsel %vm74, %v64, %v67
    %v87 = vsel %vm77, %v73, 1326507024
    %v88 = vsel %vm76, %v70, %v87
    %v89 = vsel %vm75, %v86, %v88
    %v90 = vshll.u32 %v50, 8
    %v91 = vmul.u32.u64.compose %v90, %v89
    %v92 = vextract.low.u32 %v91
    %v93 = vextract.high.u32 %v91
    %v94 = vmul.u32.u64.compose %v90, %v85
    %v95 = vextract.low.u32 %v94
    %v96 = vextract.high.u32 %v94
    %v97 = vmul.u32 %v90, %v81
    %v98 = vadd.s32 %v93, %v95
    %vm99 = vc.u32 %v93, %v95
    %v100 = vadd.s32 %v96, 1
    %v101 = vsel %vm99, %v100, %v96
    %v102 = vadd.s32 %v97, %v101
    %v103 = vadd.s32 %v102, 536870912
    %v104 = vshrl.u32 %v103, 30
    %v105 = vshll.u32 %v104, 30
    %v106 = vsub.s32 %v102, %v105
    %vm107 = vcmp.lt.s32.totalorder %v106, 0
    %v108 = vsub.s32 0, %v106
    %v109 = vsel %vm107, %v108, %v106
    %v110 = vclz %v109
    %v111 = vsub.s32 %v110, 2
    %vm112 = vcmp.gt.s32.totalorder 0, %v111
    %v113 = vsel %vm112, 0, %v111
    %v114 = vsub.s32 32, %v113
    %v115 = vshll.u32 %v106, %v113
    %v116 = vshrl.u32 %v98, %v114
    %v117 = vor.u32 %v115, %v116
    %v118 = vsub.s32 4294967266, %v113
    %v119 = vadd.s32 %v118, 127
    %v120 = vshll.u32 %v119, 23
    %v121 = vor.u32 4788187, %v120
    %v122 = vand.u32 2147483647, %v121
    %v124 = vcvt.s32.f32 %v117
    %v125 = vmul.f32 %v124, %v122
    %v126 = vxor.u32 %v125, 2147483648
    %v127 = vsel %vm44, %v126, %v125
    %v128 = vsub.s32 4, %v104
    %v129 = vsel %vm44, %v128, %v104
    %v130 = vsel %vm43, %v40, %v127
    %v131 = vsel %vm43, 0, %v129
    %v132 = vcosq.f32.pop %v130
    %v133 = vsinq.f32.pop %v130
    %vm134 = vweird.f32 %v40
    %v135 = vadd.s32 %v131, 3
    %v136 = vand.u32 %v135, 3
    %vm137 = vcmp.lt.s32.totalorder %v136, 2
    %vm138 = vcmp.eq.s32.totalorder %v136, 0
    %v139 = vxor.u32 %v133, 2147483648
    %v140 = vsel %vm138, %v132, %v139
    %vm141 = vcmp.eq.s32.totalorder %v136, 2
    %v142 = vxor.u32 %v132, 2147483648
    %v143 = vsel %vm141, %v142, %v133
    %v144 = vsel %vm137, %v140, %v143
    %v145 = vsel %vm134, nan, %v144
    %v146 = vand.u32 2147483647, %v40
    %vm147 = vcmp.le.f32.partialorder %v146, 0.7853982
    %vm148 = vcmp.lt.s32.totalorder %v40, 0
    %v149 = vand.u32 %v40, 2139095040
    %v150 = vshrl.u32 %v149, 23
    %v151 = vsub.s32 %v150, 127
    %v152 = vand.u32 2147483647, %v40
    %v153 = vand.u32 %v152, 8388607
    %v154 = vor.u32 %v153, 8388608
    %v155 = vsub.s32 0, %v154
    %v156 = vadd.s32 %v151, 1
    %vm157 = vcmp.gt.s32.totalorder %v156, 0
    %v158 = vsel %vm157, %v156, 0
    %v159 = vshrl.u32 %v158, 5
    %v160 = vand.u32 %v158, 31
    %v161 = vsub.s32 32, %v160
    %v162 = vshrl.u32 683565275, %v161
    %v163 = vshll.u32 683565275, %v160
    %v164 = vshrl.u32 2475754826, %v161
    %v165 = vor.u32 %v163, %v164
    %v166 = vshll.u32 2475754826, %v160
    %v167 = vshrl.u32 2131351028, %v161
    %v168 = vor.u32 %v166, %v167
    %v169 = vshll.u32 2131351028, %v160
    %v170 = vshrl.u32 2102212464, %v161
    %v171 = vor.u32 %v169, %v170
    %v172 = vshll.u32 2102212464, %v160
    %v173 = vshrl.u32 920167782, %v161
    %v174 = vor.u32 %v172, %v173
    %v175 = vshll.u32 920167782, %v160
    %v176 = vshrl.u32 1326507024, %v161
    %v177 = vor.u32 %v175, %v176
    %vm178 = vcmp.lt.s32.totalorder %v159, 1
    %vm179 = vcmp.lt.s32.totalorder %v159, 2
    %vm180 = vcmp.lt.s32.totalorder %v159, 3
    %vm181 = vcmp.lt.s32.totalorder %v159, 4
    %v182 = vsel %vm178, %v162, %v165
    %v183 = vsel %vm181, %v171, 2102212464
    %v184 = vsel %vm180, %v168, %v183
    %v185 = vsel %vm179, %v182, %v184
    %v186 = vsel %vm178, %v165, %v168
    %v187 = vsel %vm181, %v174, 920167782
    %v188 = vsel %vm180, %v171, %v187
    %v189 = vsel %vm179, %v186, %v188
    %v190 = vsel %vm178, %v168, %v171
    %v191 = vsel %vm181, %v177, 1326507024
    %v192 = vsel %vm180, %v174, %v191
    %v193 = vsel %vm179, %v190, %v192
    %v194 = vshll.u32 %v154, 8
    %v195 = vmul.u32.u64.compose %v194, %v193
    %v196 = vextract.low.u32 %v195
    %v197 = vextract.high.u32 %v195
    %v198 = vmul.u32.u64.compose %v194, %v189
    %v199 = vextract.low.u32 %v198
    %v200 = vextract.high.u32 %v198
    %v201 = vmul.u32 %v194, %v185
    %v202 = vadd.s32 %v197, %v199
    %vm203 = vc.u32 %v197, %v199
    %v204 = vadd.s32 %v200, 1
    %v205 = vsel %vm203, %v204, %v200
    %v206 = vadd.s32 %v201, %v205
    %v207 = vadd.s32 %v206, 536870912
    %v208 = vshrl.u32 %v207, 30
    %v209 = vshll.u32 %v208, 30
    %v210 = vsub.s32 %v206, %v209
    %vm211 = vcmp.lt.s32.totalorder %v210, 0
    %v212 = vsub.s32 0, %v210
    %v213 = vsel %vm211, %v212, %v210
    %v214 = vclz %v213
    %v215 = vsub.s32 %v214, 2
    %vm216 = vcmp.gt.s32.totalorder 0, %v215
    %v217 = vsel %vm216, 0, %v215
    %v218 = vsub.s32 32, %v217
    %v219 = vshll.u32 %v210, %v217
    %v220 = vshrl.u32 %v202, %v218
    %v221 = vor.u32 %v219, %v220
    %v222 = vsub.s32 4294967266, %v217
    %v223 = vadd.s32 %v222, 127
    %v224 = vshll.u32 %v223, 23
    %v225 = vor.u32 4788187, %v224
    %v226 = vand.u32 2147483647, %v225
    %v228 = vcvt.s32.f32 %v221
    %v229 = vmul.f32 %v228, %v226
    %v230 = vxor.u32 %v229, 2147483648
    %v231 = vsel %vm148, %v230, %v229
    %v232 = vsub.s32 4, %v208
    %v233 = vsel %vm148, %v232, %v208
    %v234 = vsel %vm147, %v40, %v231
    %v235 = vsel %vm147, 0, %v233
    %v236 = vcosq.f32.pop %v234
    %v237 = vsinq.f32.pop %v234
    %vm238 = vweird.f32 %v40
    %v239 = vand.u32 %v235, 3
    %vm240 = vcmp.lt.s32.totalorder %v239, 2
    %vm241 = vcmp.eq.s32.totalorder %v239, 0
    %v242 = vxor.u32 %v237, 2147483648
    %v243 = vsel %vm241, %v236, %v242
    %vm244 = vcmp.eq.s32.totalorder %v239, 2
    %v245 = vxor.u32 %v236, 2147483648
    %v246 = vsel %vm244, %v245, %v237
    %v247 = vsel %vm240, %v243, %v246
    %v248 = vsel %vm238, nan, %v247
    %v249 = vsel %vm41, 1, 0
    %v250 = vlaneseq
    %v251 = vshrl.u32 %v250, 7
    %v252 = vsub.s32 0, %v251
    %v253 = vrot.slane %v249, %v252
    %vm254 = vcmp.eq.s32.totalorder %v253, 1
    %v255 = vsel %vm254, %v145, %v248
    %256 = vst [vmem:[#allocation5] sm:$0xf] %v255
    // Predicated region
    $region10: #{tpu_custom_call.1} parent=1 // pred_check
      _
    $region11: #{tpu_custom_call.1} parent=1 // pred_check_branch
      %258 = sbr.rel (0) target = $region13
    $region12: #{tpu_custom_call.1} parent=1 // pred_region
      %s260 = ssub.s32 64, 64
      %261 = vsyncadd [#allocation4], %s260
      %s263 = sshll.u32 [#allocation5], 4
      %s264 = int_to_ptr.vmem [resolvable:$true] %s263
      %266 = dma.vmem_to_hbm [thread:$0]  %s264, 64, %s1, [#allocation4]
    $region13: #{tpu_custom_call.1} parent=1 // pred_fallthru
      _
    // Predicated region
    $region14: #{tpu_custom_call.1} parent=1 // pred_check
      _
    $region15: #{tpu_custom_call.1} parent=1 // pred_check_branch
      %268 = sbr.rel (0) target = $region17
    $region16: #{tpu_custom_call.1} parent=1 // pred_region
      %269 = dma.done [#allocation4], 64
    $region17: #{tpu_custom_call.1} parent=1 // pred_fallthru
      _
    %270 = vsyncpa [#allocation3], 1
    %271 = vsyncpa [#allocation4], 1

</llo_original>
